<compile_context>
chip_gen: v5e
topology: v5e:2x2
jax: 0.10.0
libtpu: 0.0.40
codegen_flags: <defaults>
</compile_context>

<pallas_src>
import jax
import jax.numpy as jnp
from jax.experimental import pallas as pl
from jax.experimental.pallas import tpu as pltpu


# ----------------------------------------------------------------------------
# Primary path: no-copy identity (aliased output; no in-kernel data movement).
# ----------------------------------------------------------------------------
def _identity_alias_kernel(x_ref, o_ref):
    del x_ref  # same HBM buffer as o_ref via input_output_aliases
    pltpu.touch(o_ref)  # fake read+write dep so the aliased output is "produced"


def identity(x: jax.Array) -> jax.Array:
    """Identity forward: y = x, with zero in-kernel data movement.

    For a true zero-copy, call under jax.jit with this argument donated
    (donate_argnums); otherwise XLA inserts one defensive copy of x.
    """
    try:
        return pl.pallas_call(
            _identity_alias_kernel,
            out_shape=jax.ShapeDtypeStruct(x.shape, x.dtype),
            in_specs=[pl.BlockSpec(memory_space=pl.ANY)],
            out_specs=pl.BlockSpec(memory_space=pl.ANY),
            input_output_aliases={0: 0},
        )(x)
    except Exception:
        # If touch-on-HBM is rejected on some backend, fall back to a real
        # copy (value-identical result).
        return identity_copy(x)


# ----------------------------------------------------------------------------
# Copy path: direct HBM->HBM DMA (striped), with a pipelined VMEM fallback.
# ----------------------------------------------------------------------------
def _make_dma_copy_kernel(stripe_bounds):
    def kernel(x_ref, o_ref, sems):
        copies = []
        for i, (start, size) in enumerate(stripe_bounds):
            cp = pltpu.make_async_copy(
                x_ref.at[pl.ds(start, size)],
                o_ref.at[pl.ds(start, size)],
                sems.at[i],
            )
            cp.start()
            copies.append(cp)
        for cp in copies:
            cp.wait()
    return kernel


def _identity_copy_dma(x: jax.Array) -> jax.Array:
    itemsize = jnp.dtype(x.dtype).itemsize
    nbytes = x.size * itemsize
    lead = x.shape[0]
    # Stripe large copies across several in-flight DMAs; single DMA otherwise.
    n_stripes = min(8, lead) if (nbytes >= (8 << 20) and lead > 1) else 1

    base, rem = divmod(lead, n_stripes)
    bounds, start = [], 0
    for i in range(n_stripes):
        size = base + (1 if i < rem else 0)
        bounds.append((start, size))
        start += size

    return pl.pallas_call(
        _make_dma_copy_kernel(tuple(bounds)),
        out_shape=jax.ShapeDtypeStruct(x.shape, x.dtype),
        in_specs=[pl.BlockSpec(memory_space=pl.ANY)],
        out_specs=pl.BlockSpec(memory_space=pl.ANY),
        scratch_shapes=[pltpu.SemaphoreType.DMA((n_stripes,))],
        cost_estimate=pl.CostEstimate(
            flops=0, transcendentals=0, bytes_accessed=2 * nbytes),
    )(x)


def _copy_kernel(x_ref, o_ref):
    o_ref[...] = x_ref[...]


def _identity_copy_pipelined(x: jax.Array) -> jax.Array:
    orig_shape = x.shape
    total = x.size
    itemsize = jnp.dtype(x.dtype).itemsize

    # Lane-dense 2D view: pad flattened length to a multiple of 1024 (8x128)
    # so the last dim is always a multiple of 128 (unmasked vst), slice after.
    flat = x.reshape(total)
    pad = (-total) % 1024
    if pad:
        flat = jnp.pad(flat, (0, pad))
    padded = total + pad

    C = 128
    while C * 2 <= 8192 and padded % (C * 2) == 0:
        C *= 2
    R = padded // C

    # ~3 MiB blocks (clamped by construction): with double-buffered in+out
    # (~4 live blocks, ~12 MiB) this fits the default scoped VMEM everywhere.
    max_block_bytes = 3 * 1024 * 1024
    rows_for_target = max(max_block_bytes // (C * itemsize), 1)
    if rows_for_target >= R:
        tile_r = R
    else:
        tile_r = max((rows_for_target // 8) * 8, 8)
    grid = (pl.cdiv(R, tile_r),)

    out2 = pl.pallas_call(
        _copy_kernel,
        out_shape=jax.ShapeDtypeStruct((R, C), x.dtype),
        grid=grid,
        in_specs=[pl.BlockSpec((tile_r, C), lambda i: (i, 0))],
        out_specs=pl.BlockSpec((tile_r, C), lambda i: (i, 0)),
        compiler_params=pltpu.CompilerParams(
            dimension_semantics=("parallel",)),
        cost_estimate=pl.CostEstimate(
            flops=0, transcendentals=0,
            bytes_accessed=2 * padded * itemsize),
    )(flat.reshape(R, C))

    out_flat = out2.reshape(padded)
    if pad:
        out_flat = out_flat[:total]
    return out_flat.reshape(orig_shape)


def identity_copy(x: jax.Array) -> jax.Array:
    """Identity that materializes a fresh output buffer (HBM-roofline copy)."""
    if x.size == 0:
        return x  # nothing to copy
    if x.ndim == 0:
        y = pl.pallas_call(
            _copy_kernel,
            out_shape=jax.ShapeDtypeStruct((1, 1), x.dtype),
        )(x.reshape(1, 1))
        return y.reshape(())
    try:
        return _identity_copy_dma(x)
    except Exception:
        # Fallback if the HBM->HBM DMA is rejected for this shape/backend.
        return _identity_copy_pipelined(x)


if __name__ == "__main__":
    key = jax.random.PRNGKey(0)
    # Small NCHW input consistent with typical conv-feature usage of Identity.
    x = jax.random.normal(key, (2, 4, 16, 16), dtype=jnp.float32)

    # Primary (aliased, no-copy) path.
    y = identity(x)
    jax.block_until_ready(y)
    assert y.shape == x.shape, (y.shape, x.shape)
    assert y.dtype == x.dtype, (y.dtype, x.dtype)
    assert bool(jnp.array_equal(y, x)), "identity (alias) output mismatch"

    # Copy path (direct HBM->HBM DMA).
    y2 = identity_copy(x)
    jax.block_until_ready(y2)
    assert y2.shape == x.shape, (y2.shape, x.shape)
    assert y2.dtype == x.dtype, (y2.dtype, x.dtype)
    assert bool(jnp.array_equal(y2, x)), "identity_copy output mismatch"

    print("KERNEL_OK")
</pallas_src>

<mosaic_0001>
module attributes {stable_mosaic.version = 11 : i64} {
  func.func @_identity_alias_kernel(%arg0: memref<2x4x16x16xf32, #tpu.memory_space<any>>, %arg1: memref<2x4x16x16xf32, #tpu.memory_space<any>>) attributes {dimension_semantics = [], scalar_prefetch = 0 : i64, scratch_operands = 0 : i64, tpu.core_type = #tpu.core_type<tc>} {
    return
  }
}

module attributes {stable_mosaic.version = 11 : i64} {
  func.func @kernel(%arg0: memref<2x4x16x16xf32, #tpu.memory_space<any>>, %arg1: memref<2x4x16x16xf32, #tpu.memory_space<any>>, %arg2: memref<1x!tpu.dma_semaphore, #tpu.memory_space<semaphore_mem>>) attributes {dimension_semantics = [], scalar_prefetch = 0 : i64, scratch_operands = 1 : i64, tpu.core_type = #tpu.core_type<tc>} {
    %c0_i32 = arith.constant 0 : i32
    %c0_i32_0 = arith.constant 0 : i32
    %c0_i32_1 = arith.constant 0 : i32
    %c0_i32_2 = arith.constant 0 : i32
    %c0_i32_3 = arith.constant 0 : i32
    %0 = tpu.memref_slice %arg0[%c0_i32_0, %c0_i32_1, %c0_i32_2, %c0_i32_3] : memref<2x4x16x16xf32, #tpu.memory_space<any>> -> memref<2x4x16x16xf32, #tpu.memory_space<any>>
    %c0_i32_4 = arith.constant 0 : i32
    %c0_i32_5 = arith.constant 0 : i32
    %c0_i32_6 = arith.constant 0 : i32
    %c0_i32_7 = arith.constant 0 : i32
    %1 = tpu.memref_slice %arg1[%c0_i32_4, %c0_i32_5, %c0_i32_6, %c0_i32_7] : memref<2x4x16x16xf32, #tpu.memory_space<any>> -> memref<2x4x16x16xf32, #tpu.memory_space<any>>
    %2 = tpu.memref_slice %arg2[%c0_i32] : memref<1x!tpu.dma_semaphore, #tpu.memory_space<semaphore_mem>> -> memref<1x!tpu.dma_semaphore, #tpu.memory_space<semaphore_mem>>
    %3 = tpu.memref_squeeze %2 : memref<1x!tpu.dma_semaphore, #tpu.memory_space<semaphore_mem>> -> memref<!tpu.dma_semaphore, #tpu.memory_space<semaphore_mem>>
    tpu.enqueue_dma source(%0 : memref<2x4x16x16xf32, #tpu.memory_space<any>>) target(%1 : memref<2x4x16x16xf32, #tpu.memory_space<any>>) target_semaphore(%3 : memref<!tpu.dma_semaphore, #tpu.memory_space<semaphore_mem>>)
    %c0_i32_8 = arith.constant 0 : i32
    %c0_i32_9 = arith.constant 0 : i32
    %c0_i32_10 = arith.constant 0 : i32
    %c0_i32_11 = arith.constant 0 : i32
    %c0_i32_12 = arith.constant 0 : i32
    %4 = tpu.memref_slice %arg0[%c0_i32_9, %c0_i32_10, %c0_i32_11, %c0_i32_12] : memref<2x4x16x16xf32, #tpu.memory_space<any>> -> memref<2x4x16x16xf32, #tpu.memory_space<any>>
    %c0_i32_13 = arith.constant 0 : i32
    %c0_i32_14 = arith.constant 0 : i32
    %c0_i32_15 = arith.constant 0 : i32
    %c0_i32_16 = arith.constant 0 : i32
    %5 = tpu.memref_slice %arg1[%c0_i32_13, %c0_i32_14, %c0_i32_15, %c0_i32_16] : memref<2x4x16x16xf32, #tpu.memory_space<any>> -> memref<2x4x16x16xf32, #tpu.memory_space<any>>
    %6 = tpu.memref_slice %arg2[%c0_i32_8] : memref<1x!tpu.dma_semaphore, #tpu.memory_space<semaphore_mem>> -> memref<1x!tpu.dma_semaphore, #tpu.memory_space<semaphore_mem>>
    %7 = tpu.memref_squeeze %6 : memref<1x!tpu.dma_semaphore, #tpu.memory_space<semaphore_mem>> -> memref<!tpu.dma_semaphore, #tpu.memory_space<semaphore_mem>>
    tpu.wait_dma2 semaphore(%7 : memref<!tpu.dma_semaphore, #tpu.memory_space<semaphore_mem>>) src(%4 : memref<2x4x16x16xf32, #tpu.memory_space<any>>) dst(%5 : memref<2x4x16x16xf32, #tpu.memory_space<any>>)
    return
  }
}

module attributes {stable_mosaic.version = 11 : i64} {
  func.func @_copy_kernel(%arg0: i32, %arg1: memref<1x2048xf32, #tpu.memory_space<vmem>>, %arg2: memref<1x2048xf32, #tpu.memory_space<vmem>>) attributes {dimension_semantics = [#tpu.dimension_semantics<parallel>], iteration_bounds = array<i64: 1>, scalar_prefetch = 0 : i64, scratch_operands = 0 : i64, tpu.core_type = #tpu.core_type<tc>, window_params = [{transform_indices = @transform_0, window_bounds = array<i64: 1, 2048>}, {transform_indices = @transform_1, window_bounds = array<i64: 1, 2048>}]} {
    %c0 = arith.constant 0 : index
    %c0_0 = arith.constant 0 : index
    %0 = vector.load %arg1[%c0, %c0_0] : memref<1x2048xf32, #tpu.memory_space<vmem>>, vector<1x2048xf32>
    %c0_1 = arith.constant 0 : index
    %c0_2 = arith.constant 0 : index
    %1 = vector.load %arg2[%c0_1, %c0_2] : memref<1x2048xf32, #tpu.memory_space<vmem>>, vector<1x2048xf32>
    tpu.vector_store %arg2[%c0_1, %c0_2], %0 {strides = array<i32>} : memref<1x2048xf32, #tpu.memory_space<vmem>>, vector<1x2048xf32>,
    return
  }
  func.func @transform_0(%arg0: i32) -> (i32, i32) {
    %c0_i32 = arith.constant 0 : i32
    %c0_i32_0 = arith.constant 0 : i32
    return %arg0, %c0_i32 : i32, i32
  }
  func.func @transform_1(%arg0: i32) -> (i32, i32) {
    %c0_i32 = arith.constant 0 : i32
    %c0_i32_0 = arith.constant 0 : i32
    return %arg0, %c0_i32 : i32, i32
  }
}

</mosaic_0001>

<llo_original>
// kernel: tpu_custom_call.1
$region0: #{tpu_custom_call.1}
  #allocation0 [shape = 'u32[]', space=smem, size = 0x4, offset = 0x4, fixed_abs, tag = 'smem constant byte address 0x4 - core index']
  #allocation1 [shape = 'u32[72,128]{1,0:T(1,128)}', space=vmem, size = 0x9000, scoped, tag = 'internal scratch']
  %s0 = inlined_call_operand.hbm [shape: f32[2,4,16,16], index: 0, kind: input, shape index: {}, may-alias: {0,1}]
  %s1 = inlined_call_operand.hbm [shape: f32[2,4,16,16], index: 1, kind: output, shape index: {}, may-alias: {0,1}]
  %s2 = sld [smem:[#allocation0]]
  $region2: #{tpu_custom_call.1} parent=0
    _
  %s4 = ssub.s32 1, %s2
  %s5 = scalar_select 0, %s4, %s2

// kernel: tpu_custom_call.1
$region0: #{tpu_custom_call.1}
  #allocation0 [shape = 'u32[]', space=smem, size = 0x4, offset = 0x4, fixed_abs, tag = 'smem constant byte address 0x4 - core index']
  #allocation1 [shape = 'u32[72,128]{1,0:T(1,128)}', space=vmem, size = 0x9000, scoped, tag = 'internal scratch']
  #allocation2 [shape = 's32[1]{0}', space=sflag, size = 0x4, scoped, tag = 'scratch operand']
  #allocation3 [shape = 's32[]', space=sflag, size = 0x4, offset = 0, fixed_abs, tag = 'sflag constant byte address 0x0 - dummy sync flag']
  #allocation4 [shape = 'u32[0]{0}', space=smem, size = 0, offset = 0, fixed_abs, tag = 'smem constant byte address 0x0 - null']
  %s0 = inlined_call_operand.hbm [shape: f32[2,4,16,16], index: 0, kind: input, shape index: {}]
  %s1 = inlined_call_operand.hbm [shape: f32[2,4,16,16], index: 1, kind: output, shape index: {}]
  %s2 = sld [smem:[#allocation0]]
  $region2: #{tpu_custom_call.1} parent=0
    _
  %s4 = ssub.s32 1, %s2
  %s5 = scalar_select 0, %s4, %s2
  %s7 = sshll.u32 1, 14
  %s8 = sxor.u32 4294967295, %s7
  %s10 = sshll.u32 %s0, 4
  %s11 = int_to_ptr.hbm [resolvable:$true] %s10
  %s12 = sshll.u32 %s1, 4
  %s13 = int_to_ptr.hbm [resolvable:$true] %s12
  %16 = dma.general %s11, 2048, %s13, [#allocation2], [#allocation3], [#allocation4], 0, 0
  %s17 = smul.u32 2, 4
  %s18 = smul.u32 %s17, 16
  %s19 = smul.u32 %s18, 1
  %s20 = sshll.u32 %s19, 4
  %21 = dma.done [#allocation2], %s20
  %22 = vsyncmov [#allocation2]
  %s23 = vpop.sfrf %22
  %p24 = scmp.eq.s32.totalorder %s23, 0
  %p25 = pneg %p24
  %27 = shalt.err (%p25)

// kernel: tpu_custom_call.1
$region0: #{tpu_custom_call.1}
  #allocation0 [shape = 'u32[]', space=smem, size = 0x4, offset = 0x4, fixed_abs, tag = 'smem constant byte address 0x4 - core index']
  #allocation1 [shape = 'u32[72,128]{1,0:T(1,128)}', space=vmem, size = 0x9000, scoped, tag = 'internal scratch']
  %s0 = inlined_call_operand.hbm [shape: f32[1,2048], index: 0, kind: input, shape index: {}]
  %s1 = inlined_call_operand.hbm [shape: f32[1,2048], index: 1, kind: output, shape index: {}]
  %s2 = sld [smem:[#allocation0]]
  $region18: #{tpu_custom_call.1} parent=0
    _
  %s4 = ssub.s32 1, %s2
  %s5 = scalar_select 0, %s4, %s2
  $region1: #{tpu_custom_call.1} parent=0
    #allocation2 [shape = 'u8[8192]{0}', space=vmem, size = 0x2000, scoped, tag = 'input window, operand 0, single buffered']
    #allocation3 [shape = 's32[1]{0}', space=sflag, size = 0x4, scoped, tag = 'scoped memory for tpu_custom_call.1']
    #allocation4 [shape = 's32[1]{0}', space=sflag, size = 0x4, scoped, tag = 'scoped memory for tpu_custom_call.1']
    #allocation5 [shape = 'u8[8192]{0}', space=vmem, size = 0x2000, scoped, tag = 'output window, operand 0, single buffered']
    %6 = vsyncpa [#allocation3], 0
    %7 = vsyncpa [#allocation4], 0
    // Predicated region
    $region2: #{tpu_custom_call.1} parent=1 // pred_check
      _
    $region3: #{tpu_custom_call.1} parent=1 // pred_check_branch
      %9 = sbr.rel (0) target = $region5
    $region4: #{tpu_custom_call.1} parent=1 // pred_region
      %11 = vsyncadd [#allocation3], 0
      %s13 = sshll.u32 %s0, 4
      %s14 = int_to_ptr.hbm [resolvable:$true] %s13
      %s15 = sshll.u32 [#allocation2], 4
      %s16 = int_to_ptr.vmem [resolvable:$true] %s15
      %18 = dma.hbm_to_vmem [thread:$0]  %s14, 256, %s16, [#allocation3]
    $region5: #{tpu_custom_call.1} parent=1 // pred_fallthru
      _
    // Predicated region
    $region6: #{tpu_custom_call.1} parent=1 // pred_check
      _
    $region7: #{tpu_custom_call.1} parent=1 // pred_check_branch
      %20 = sbr.rel (0) target = $region9
    $region8: #{tpu_custom_call.1} parent=1 // pred_region
      %22 = dma.done [#allocation3], 256
    $region9: #{tpu_custom_call.1} parent=1 // pred_fallthru
      _
    %v23 = vld [vmem:[#allocation2] sm:$0xff]
    %v24 = vld [vmem:[#allocation2 + $0x8] sm:$0xff]
    %25 = vst [vmem:[#allocation5] sm:$0xff] %v23
    %26 = vst [vmem:[#allocation5 + $0x8] sm:$0xff] %v24
    // Predicated region
    $region10: #{tpu_custom_call.1} parent=1 // pred_check
      _
    $region11: #{tpu_custom_call.1} parent=1 // pred_check_branch
      %28 = sbr.rel (0) target = $region13
    $region12: #{tpu_custom_call.1} parent=1 // pred_region
      %30 = vsyncadd [#allocation4], 0
      %s32 = sshll.u32 [#allocation5], 4
      %s33 = int_to_ptr.vmem [resolvable:$true] %s32
      %s34 = sshll.u32 %s1, 4
      %s35 = int_to_ptr.hbm [resolvable:$true] %s34
      %37 = dma.vmem_to_hbm [thread:$0]  %s33, 256, %s35, [#allocation4]
    $region13: #{tpu_custom_call.1} parent=1 // pred_fallthru
      _
    // Predicated region
    $region14: #{tpu_custom_call.1} parent=1 // pred_check
      _
    $region15: #{tpu_custom_call.1} parent=1 // pred_check_branch
      %39 = sbr.rel (0) target = $region17
    $region16: #{tpu_custom_call.1} parent=1 // pred_region
      %41 = dma.done [#allocation4], 256
    $region17: #{tpu_custom_call.1} parent=1 // pred_fallthru
      _
    %42 = vsyncpa [#allocation3], 1
    %43 = vsyncpa [#allocation4], 1

</llo_original>
